<compile_context>
chip_gen: v7x
topology: tpu7x:2x2x1
jax: 0.10.0
libtpu: 0.0.40
codegen_flags: <defaults>
</compile_context>

<pallas_src>
import functools

import jax
import jax.numpy as jnp
from jax import lax
from jax.experimental import pallas as pl
from jax.experimental.pallas import tpu as pltpu


# ---------------------------------------------------------------------------
# pltpu.roll shift-convention probe (run once, cached)
# ---------------------------------------------------------------------------
def _roll_probe_kernel(x_ref, o_ref):
    o_ref[...] = pltpu.roll(x_ref[...], shift=1, axis=1)


_ROLL_NUMPY_LIKE = None


def _roll_is_numpy_like() -> bool:
    """True if pltpu.roll follows jnp.roll semantics: out[i] = in[i - shift]."""
    global _ROLL_NUMPY_LIKE
    if _ROLL_NUMPY_LIKE is None:
        x = lax.broadcasted_iota(jnp.float32, (8, 128), 1)
        out = pl.pallas_call(
            _roll_probe_kernel,
            out_shape=jax.ShapeDtypeStruct((8, 128), jnp.float32),
        )(x)
        out = jax.device_get(out)
        # numpy-like: out[:, 0] == 127 ; flipped: out[:, 0] == 1
        _ROLL_NUMPY_LIKE = bool(out[0, 0] == 127.0)
    return _ROLL_NUMPY_LIKE


# ---------------------------------------------------------------------------
# kernel (channel-major: every tensor is (channels, H*W))
# ---------------------------------------------------------------------------
def _ffn_kernel(x_ref, w1_ref, b1_ref, wd1_ref, bd1_ref,
                w2_ref, b2_ref, wd2_ref, bd2_ref,
                wo_ref, bo_ref, mask_ref, o_ref,
                *, W, roll_numpy_like):
    HW = x_ref.shape[2]
    x = x_ref[0]                              # (C, HW), native dtype

    masks = mask_ref[...]                     # (9, HW) {0,1} f32
    mask_rows = [masks[k:k + 1, :] for k in range(9)]   # hoisted, shared by halves

    def half_path(w_ref, b_ref, wd_ref, bd_ref):
        # 1x1 conv == matmul over channels: (hid, C) @ (C, HW) -> (hid, HW)
        t = jnp.dot(w_ref[...], x, preferred_element_type=jnp.float32)
        t = t + b_ref[...]                    # (hid, 1) broadcast along lanes
        wd = wd_ref[...]                      # (hid, 9), tap k = (dy+1)*3 + (dx+1)

        # depthwise 3x3, zero padding, done directly in flat (ch, H*W) layout:
        # tap (dy, dx):  out[i] = t[i + dy*W + dx], masked at the image border.
        acc = t * wd[:, 4:5]                  # center tap (dy=dx=0), no mask needed
        k = 0
        for dy in (-1, 0, 1):
            for dx in (-1, 0, 1):
                if dy == 0 and dx == 0:
                    k += 1
                    continue
                s = dy * W + dx               # source offset
                shift = (-s) % HW if roll_numpy_like else s % HW
                shifted = pltpu.roll(t, shift=shift, axis=1)
                acc = acc + (shifted * mask_rows[k]) * wd[:, k:k + 1]
                k += 1
        return acc + bd_ref[...]              # depthwise bias, (hid, 1)

    a1 = half_path(w1_ref, b1_ref, wd1_ref, bd1_ref)   # x1 path (first hid channels)
    a2 = half_path(w2_ref, b2_ref, wd2_ref, bd2_ref)   # x2 path (second hid channels)

    g = jnp.maximum(a1, 0.0) * a2             # relu(x1) * x2, (hid, HW) f32

    # project_out: (C, hid) @ (hid, HW) -> (C, HW)
    out = jnp.dot(wo_ref[...], g, preferred_element_type=jnp.float32)
    out = out + bo_ref[...]                   # (C, 1)
    o_ref[0] = out.astype(o_ref.dtype)


# ---------------------------------------------------------------------------
# wrapper
# ---------------------------------------------------------------------------
def feedforward_pallas(x_nchw, w_in_oihw, b_in, w_dw_oihw, b_dw,
                       w_out_oihw, b_out):
    """x_nchw: (B, C, H, W) -> (B, C, H, W). Weights in PyTorch OIHW layout."""
    B, C, H, W = x_nchw.shape
    hid2 = w_in_oihw.shape[0]
    hid = hid2 // 2
    HW = H * W

    # NCHW passes straight through; only merge the trailing spatial dims (free).
    x2d = x_nchw.reshape(B, C, HW)

    # Repack weights: split into x1/x2 halves along the leading channel axis so
    # the kernel never slices the channel (sublane) dim at an unaligned offset.
    w_in2 = w_in_oihw[:, :, 0, 0]                       # (2*hid, C)
    wd_all = w_dw_oihw[:, 0, :, :].reshape(hid2, 9)     # (2*hid, 9)
    w_out2 = w_out_oihw[:, :, 0, 0]                     # (C, hid)

    w_a, w_b = w_in2[:hid], w_in2[hid:]
    b_a, b_b = b_in[:hid, None], b_in[hid:, None]
    wd_a, wd_b = wd_all[:hid], wd_all[hid:]
    bd_a, bd_b = b_dw[:hid, None], b_dw[hid:, None]
    bo = b_out[:, None]

    # Per-tap {0,1} border masks for the zero-padded 3x3 depthwise (flat layout).
    yy, xx = jnp.meshgrid(jnp.arange(H), jnp.arange(W), indexing="ij")
    yy = yy.reshape(HW)
    xx = xx.reshape(HW)
    rows = []
    for dy in (-1, 0, 1):
        for dx in (-1, 0, 1):
            valid = ((yy + dy >= 0) & (yy + dy < H) &
                     (xx + dx >= 0) & (xx + dx < W))
            rows.append(valid.astype(jnp.float32))
    mask = jnp.stack(rows, axis=0)                      # (9, HW)

    kernel = functools.partial(_ffn_kernel, W=W,
                               roll_numpy_like=_roll_is_numpy_like())

    def full(shape):
        return pl.BlockSpec(shape, lambda b, _n=len(shape): (0,) * _n)

    out2d = pl.pallas_call(
        kernel,
        out_shape=jax.ShapeDtypeStruct((B, C, HW), x_nchw.dtype),
        grid_spec=pl.GridSpec(
            grid=(B,),
            in_specs=[
                pl.BlockSpec((1, C, HW), lambda b: (b, 0, 0)),   # x
                full((hid, C)), full((hid, 1)), full((hid, 9)), full((hid, 1)),
                full((hid, C)), full((hid, 1)), full((hid, 9)), full((hid, 1)),
                full((C, hid)), full((C, 1)),
                full((9, HW)),
            ],
            out_specs=pl.BlockSpec((1, C, HW), lambda b: (b, 0, 0)),
        ),
        compiler_params=pltpu.CompilerParams(
            dimension_semantics=("parallel",),
            vmem_limit_bytes=48 * 1024 * 1024,
        ),
    )(x2d, w_a, b_a, wd_a, bd_a, w_b, b_b, wd_b, bd_b, w_out2, bo, mask)

    return out2d.reshape(B, C, H, W)


# ---------------------------------------------------------------------------
# pure-JAX reference (mirrors the PyTorch forward, NCHW)
# ---------------------------------------------------------------------------
def feedforward_reference(x_nchw, w_in_oihw, b_in, w_dw_oihw, b_dw,
                          w_out_oihw, b_out):
    hid2 = w_in_oihw.shape[0]
    dn = ('NCHW', 'OIHW', 'NCHW')
    y = lax.conv_general_dilated(x_nchw, w_in_oihw, (1, 1), 'VALID',
                                 dimension_numbers=dn)
    y = y + b_in[None, :, None, None]
    y = lax.conv_general_dilated(y, w_dw_oihw, (1, 1), ((1, 1), (1, 1)),
                                 dimension_numbers=dn, feature_group_count=hid2)
    y = y + b_dw[None, :, None, None]
    x1, x2 = jnp.split(y, 2, axis=1)
    g = jnp.maximum(x1, 0.0) * x2
    out = lax.conv_general_dilated(g, w_out_oihw, (1, 1), 'VALID',
                                   dimension_numbers=dn)
    return out + b_out[None, :, None, None]


if __name__ == "__main__":
    # Small shapes: dim=4, hidden=12, 2*hidden=24, batch=2, spatial 16x16.
    B, C, H, W = 2, 4, 16, 16
    hid = 3 * C
    hid2 = 2 * hid

    key = jax.random.PRNGKey(0)
    k = jax.random.split(key, 7)
    x = jax.random.normal(k[0], (B, C, H, W), jnp.float32)
    w_in = jax.random.normal(k[1], (hid2, C, 1, 1), jnp.float32) * 0.1
    b_in = jax.random.normal(k[2], (hid2,), jnp.float32) * 0.1
    w_dw = jax.random.normal(k[3], (hid2, 1, 3, 3), jnp.float32) * 0.1
    b_dw = jax.random.normal(k[4], (hid2,), jnp.float32) * 0.1
    w_out = jax.random.normal(k[5], (C, hid, 1, 1), jnp.float32) * 0.1
    b_out = jax.random.normal(k[6], (C,), jnp.float32) * 0.1

    out = feedforward_pallas(x, w_in, b_in, w_dw, b_dw, w_out, b_out)
    out = jax.block_until_ready(out)

    ref = feedforward_reference(x, w_in, b_in, w_dw, b_dw, w_out, b_out)
    ref = jax.block_until_ready(ref)

    assert out.shape == (B, C, H, W)
    err = float(jnp.max(jnp.abs(out - ref)))
    assert jnp.allclose(out, ref, rtol=1e-4, atol=1e-4), f"max abs err {err}"
    print("KERNEL_OK")
</pallas_src>

<mosaic_0001>
module attributes {stable_mosaic.version = 11 : i64} {
  func.func @_roll_probe_kernel(%arg0: memref<8x128xf32, #tpu.memory_space<vmem>>, %arg1: memref<8x128xf32, #tpu.memory_space<vmem>>) attributes {dimension_semantics = [], scalar_prefetch = 0 : i64, scratch_operands = 0 : i64, tpu.core_type = #tpu.core_type<tc>} {
    %c0 = arith.constant 0 : index
    %c0_0 = arith.constant 0 : index
    %0 = vector.load %arg0[%c0, %c0_0] : memref<8x128xf32, #tpu.memory_space<vmem>>, vector<8x128xf32>
    %c1_i32 = arith.constant 1 : i32
    %1 = tpu.dynamic_rotate %0 by %c1_i32 dim 1 : vector<8x128xf32>, i32 -> vector<8x128xf32>
    %c0_1 = arith.constant 0 : index
    %c0_2 = arith.constant 0 : index
    %2 = vector.load %arg1[%c0_1, %c0_2] : memref<8x128xf32, #tpu.memory_space<vmem>>, vector<8x128xf32>
    tpu.vector_store %arg1[%c0_1, %c0_2], %1 {strides = array<i32>} : memref<8x128xf32, #tpu.memory_space<vmem>>, vector<8x128xf32>,
    return
  }
}

</mosaic_0001>

<llo_original>
// kernel: tpu_custom_call.1
$region0: #{tpu_custom_call.1}
  #allocation0 [shape = 'u32[]', space=smem, size = 0x4, offset = 0x4, fixed_abs, tag = 'smem constant byte address 0x4 - core index']
  #allocation1 [shape = 'u32[144,128]{1,0:T(1,128)}', space=vmem, size = 0x12000, scoped, tag = 'internal scratch']
  %s0 = inlined_call_operand.hbm [shape: f32[8,128], index: 0, kind: input, shape index: {}]
  %s1 = inlined_call_operand.hbm [shape: f32[8,128], index: 1, kind: output, shape index: {}]
  %s2 = sld [smem:[#allocation0]]
  $region18: #{tpu_custom_call.1} parent=0
    _
  %s4 = ssub.s32 1, %s2
  %s5 = scalar_select 0, %s4, %s2
  $region1: #{tpu_custom_call.1} parent=0
    #allocation2 [shape = 'u8[4096]{0}', space=vmem, size = 0x1000, scoped, tag = 'input window, operand 0, single buffered']
    #allocation3 [shape = 's32[1]{0}', space=sflag, size = 0x4, scoped, tag = 'scoped memory for tpu_custom_call.1']
    #allocation4 [shape = 's32[1]{0}', space=sflag, size = 0x4, scoped, tag = 'scoped memory for tpu_custom_call.1']
    #allocation5 [shape = 'u8[4096]{0}', space=vmem, size = 0x1000, scoped, tag = 'output window, operand 0, single buffered']
    %6 = vsyncpa [#allocation3], 0
    %7 = vsyncpa [#allocation4], 0
    // Predicated region
    $region2: #{tpu_custom_call.1} parent=1 // pred_check
      _
    $region3: #{tpu_custom_call.1} parent=1 // pred_check_branch
      %9 = sbr.rel (0) target = $region5
    $region4: #{tpu_custom_call.1} parent=1 // pred_region
      %s11 = ssub.s32 128, 128
      %12 = vsyncadd [#allocation3], %s11
      %s14 = sshll.u32 [#allocation2], 4
      %s15 = int_to_ptr.vmem [resolvable:$true] %s14
      %17 = dma.hbm_to_vmem [thread:$0]  %s0, 128, %s15, [#allocation3]
    $region5: #{tpu_custom_call.1} parent=1 // pred_fallthru
      _
    // Predicated region
    $region6: #{tpu_custom_call.1} parent=1 // pred_check
      _
    $region7: #{tpu_custom_call.1} parent=1 // pred_check_branch
      %19 = sbr.rel (0) target = $region9
    $region8: #{tpu_custom_call.1} parent=1 // pred_region
      %20 = dma.done [#allocation3], 128
    $region9: #{tpu_custom_call.1} parent=1 // pred_fallthru
      _
    %v21 = vld [vmem:[#allocation2] sm:$0xff]
    %22 = vrot.lane.b32.xlu0 %v21, 1
    %v23 = vpop.permute.xlu0 %22
    %24 = vst [vmem:[#allocation5] sm:$0xff] %v23
    // Predicated region
    $region10: #{tpu_custom_call.1} parent=1 // pred_check
      _
    $region11: #{tpu_custom_call.1} parent=1 // pred_check_branch
      %26 = sbr.rel (0) target = $region13
    $region12: #{tpu_custom_call.1} parent=1 // pred_region
      %s28 = ssub.s32 128, 128
      %29 = vsyncadd [#allocation4], %s28
      %s31 = sshll.u32 [#allocation5], 4
      %s32 = int_to_ptr.vmem [resolvable:$true] %s31
      %34 = dma.vmem_to_hbm [thread:$0]  %s32, 128, %s1, [#allocation4]
    $region13: #{tpu_custom_call.1} parent=1 // pred_fallthru
      _
    // Predicated region
    $region14: #{tpu_custom_call.1} parent=1 // pred_check
      _
    $region15: #{tpu_custom_call.1} parent=1 // pred_check_branch
      %36 = sbr.rel (0) target = $region17
    $region16: #{tpu_custom_call.1} parent=1 // pred_region
      %37 = dma.done [#allocation4], 128
    $region17: #{tpu_custom_call.1} parent=1 // pred_fallthru
      _
    %38 = vsyncpa [#allocation3], 1
    %39 = vsyncpa [#allocation4], 1

</llo_original>
